<compile_context>
chip_gen: v7x
topology: tpu7x:2x2x1
jax: 0.10.0
libtpu: 0.0.40
codegen_flags: <defaults>
</compile_context>

<pallas_src>
import jax
import jax.numpy as jnp
from jax import lax
from jax.experimental import pallas as pl
from jax.experimental.pallas import tpu as pltpu

LN_EPS = 1e-5      # nn.LayerNorm default eps
NORM_EPS = 1e-12   # F.normalize default eps
COS_EPS = 1e-8     # F.cosine_similarity default eps (reference only)


def _sim_kernel(a_ref, b_ref, gamma_ref, beta_ref, w_ref, bias_ref, alpha_ref,
                sim_ref):
    gamma = gamma_ref[...]                 # (1, D) f32
    beta = beta_ref[...]                   # (1, D) f32
    w = w_ref[...]                         # (D, H) row dtype (bf16 by default)
    bias = bias_ref[...]                   # (1, H) f32
    alpha = alpha_ref[0]                   # scalar PReLU weight (SMEM)

    a = a_ref[...]                              # rgcn side, no LayerNorm
    braw = b_ref[...].astype(jnp.float32)       # fairwalk side, LayerNorm

    # LayerNorm(input_dim) on the fairwalk side only (f32 VPU math).
    mu = jnp.mean(braw, axis=-1, keepdims=True)
    xc = braw - mu
    var = jnp.mean(xc * xc, axis=-1, keepdims=True)
    b_ln = (xc * lax.rsqrt(var + LN_EPS) * gamma + beta).astype(w.dtype)

    # Two MXU matmuls against the same resident weight (no concat copy).
    ya = jnp.dot(a, w, preferred_element_type=jnp.float32) + bias
    yb = jnp.dot(b_ln, w, preferred_element_type=jnp.float32) + bias
    ya = jnp.where(ya > 0, ya, alpha * ya)      # PReLU
    yb = jnp.where(yb > 0, yb, alpha * yb)

    # Fused F.normalize + cosine: for each row,
    #   sim = <ya, yb> * rsqrt(max(|ya|^2, eps^2)) * rsqrt(max(|yb|^2, eps^2))
    # The H reductions use (1,H) x (tile,H)^T MXU matvecs so the results land
    # directly in a lane-dense (1, tile) row.
    h = w.shape[-1]
    ones_h = jnp.ones((1, h), jnp.float32)
    dn = (((1,), (1,)), ((), ()))               # contract last axes (like q @ k.T)
    dot = lax.dot_general(ones_h, ya * yb, dn, preferred_element_type=jnp.float32)
    na2 = lax.dot_general(ones_h, ya * ya, dn, preferred_element_type=jnp.float32)
    nb2 = lax.dot_general(ones_h, yb * yb, dn, preferred_element_type=jnp.float32)
    eps2 = NORM_EPS * NORM_EPS
    sim = dot * lax.rsqrt(jnp.maximum(na2, eps2)) * lax.rsqrt(jnp.maximum(nb2, eps2))
    sim_ref[0] = sim                            # (1, tile) lane-dense store


def contrastive_loss(fairwalk_keys, fairwalk_values, rgcn_emb,
                     neg_src, neg_dst, params, *, tile=1024,
                     row_dtype=jnp.bfloat16, vmem_limit_bytes=None):
    """Pallas-backed equivalent of ContrastiveLearning.forward."""
    gamma, beta, w, b, alpha = params
    D = fairwalk_values.shape[-1]
    H = w.shape[-1]
    n_pos = fairwalk_values.shape[0]
    n_neg = neg_src.shape[0]

    # ---- glue (gathers, dict lookup) in plain JAX --------------------------
    # TODO(synk): fuse these gathers into the kernel (scalar-prefetched row ids
    # + manual DMA gather from rgcn_emb / fairwalk_values) to avoid writing the
    # gathered rows to HBM and re-reading them in the kernel.
    rgcn_selected = jnp.take(rgcn_emb, fairwalk_keys, axis=0)
    neg_rgcn_src = jnp.take(rgcn_emb, neg_src, axis=0)
    num_nodes = rgcn_emb.shape[0]
    # TODO(synk): ids absent from fairwalk_keys silently map to row 0, whereas
    # the PyTorch dict lookup would raise KeyError.
    key_to_row = jnp.zeros((num_nodes,), jnp.int32).at[fairwalk_keys].set(
        jnp.arange(n_pos, dtype=jnp.int32))
    neg_fairwalk_dst = jnp.take(fairwalk_values,
                                jnp.take(key_to_row, neg_dst), axis=0)

    # ---- stack the two sides of every similarity pair ----------------------
    a_side = jnp.concatenate([rgcn_selected, neg_rgcn_src], axis=0)        # no LN
    b_side = jnp.concatenate([fairwalk_values, neg_fairwalk_dst], axis=0)  # LN
    rows = n_pos + n_neg

    # Row tile: sublane-aligned, big enough to amortize per-step overhead,
    # but capped so the grid keeps >= 2 steps (v7x: 2 TensorCores per chip).
    tile = max(8, (int(tile) // 8) * 8)
    half_rows = max(8, (((rows + 1) // 2 + 7) // 8) * 8)
    tile = min(tile, half_rows)
    r_pad = ((rows + tile - 1) // tile) * tile
    pad = r_pad - rows
    if pad:
        a_side = jnp.pad(a_side, ((0, pad), (0, 0)))
        b_side = jnp.pad(b_side, ((0, pad), (0, 0)))
    num_tiles = r_pad // tile

    sims = pl.pallas_call(
        _sim_kernel,
        out_shape=jax.ShapeDtypeStruct((num_tiles, 1, tile), jnp.float32),
        grid=(num_tiles,),
        in_specs=[
            pl.BlockSpec((tile, D), lambda i: (i, 0)),     # a_side rows
            pl.BlockSpec((tile, D), lambda i: (i, 0)),     # b_side rows
            pl.BlockSpec((1, D), lambda i: (0, 0)),        # gamma (resident)
            pl.BlockSpec((1, D), lambda i: (0, 0)),        # beta  (resident)
            pl.BlockSpec((D, H), lambda i: (0, 0)),        # W     (resident)
            pl.BlockSpec((1, H), lambda i: (0, 0)),        # bias  (resident)
            pl.BlockSpec(memory_space=pltpu.MemorySpace.SMEM),   # alpha scalar
        ],
        out_specs=pl.BlockSpec((1, 1, tile), lambda i: (i, 0, 0)),
        compiler_params=pltpu.CompilerParams(
            dimension_semantics=("parallel",),
            vmem_limit_bytes=vmem_limit_bytes),
    )(a_side.astype(row_dtype), b_side.astype(row_dtype),
      gamma.reshape(1, D).astype(jnp.float32),
      beta.reshape(1, D).astype(jnp.float32),
      w.astype(row_dtype),
      b.reshape(1, H).astype(jnp.float32),
      alpha.reshape(1).astype(jnp.float32))

    # ---- O(N+M)-scalar loss tail in plain JAX (needs the GLOBAL neg sum) ---
    sims = sims.reshape(r_pad)[:rows]
    pos_sim = sims[:n_pos]
    neg_sim = sims[n_pos:]
    neg_sum = jnp.sum(jnp.exp(neg_sim))
    # -log(e^p / (e^p + S))  ==  log(e^p + S) - p      (stable form)
    return jnp.mean(jnp.log(jnp.exp(pos_sim) + neg_sum) - pos_sim)


def reference_loss(fairwalk_keys, fairwalk_values, rgcn_emb,
                   neg_src, neg_dst, params):
    """Pure-JAX reference mirroring the PyTorch forward."""
    gamma, beta, w, b, alpha = params

    def ln(x):
        mu = jnp.mean(x, -1, keepdims=True)
        var = jnp.mean((x - mu) ** 2, -1, keepdims=True)
        return (x - mu) / jnp.sqrt(var + LN_EPS) * gamma + beta

    def proj(x):
        y = x @ w + b
        y = jnp.where(y > 0, y, alpha * y)
        return y / jnp.maximum(jnp.linalg.norm(y, axis=-1, keepdims=True), NORM_EPS)

    def cos(a, c):
        na = jnp.maximum(jnp.linalg.norm(a, axis=-1), COS_EPS)
        nc = jnp.maximum(jnp.linalg.norm(c, axis=-1), COS_EPS)
        return jnp.sum(a * c, -1) / (na * nc)

    fw = ln(fairwalk_values)
    rg = jnp.take(rgcn_emb, fairwalk_keys, axis=0)
    pos_sim = cos(proj(rg), proj(fw))
    num_nodes = rgcn_emb.shape[0]
    k2r = jnp.zeros((num_nodes,), jnp.int32).at[fairwalk_keys].set(
        jnp.arange(fairwalk_keys.shape[0], dtype=jnp.int32))
    nfd = ln(jnp.take(fairwalk_values, jnp.take(k2r, neg_dst), axis=0))
    nrs = jnp.take(rgcn_emb, neg_src, axis=0)
    neg_sim = cos(proj(nrs), proj(nfd))
    pos_exp, neg_exp = jnp.exp(pos_sim), jnp.exp(neg_sim)
    return -jnp.mean(jnp.log(pos_exp / (pos_exp + jnp.sum(neg_exp))))


if __name__ == "__main__":
    INPUT_DIM, HIDDEN_DIM = 128, 64
    NUM_NODES, N_KEYS, N_NEG = 16, 8, 8

    key = jax.random.PRNGKey(0)
    k1, k2, k3, k4, k5, k6, k7, k8 = jax.random.split(key, 8)

    # embeddings_dict ≡ (fairwalk_keys, fairwalk_values): node-id -> embedding
    fairwalk_keys = jnp.array([3, 7, 1, 12, 5, 9, 0, 14], dtype=jnp.int32)
    fairwalk_values = jax.random.normal(k1, (N_KEYS, INPUT_DIM), jnp.float32)
    rgcn_emb = jax.random.normal(k2, (NUM_NODES, INPUT_DIM), jnp.float32)
    neg_src = jax.random.randint(k3, (N_NEG,), 0, NUM_NODES, jnp.int32)
    # neg_dst must be ids present in embeddings_dict
    neg_dst = fairwalk_keys[jax.random.randint(k4, (N_NEG,), 0, N_KEYS, jnp.int32)]

    # Deterministic parameters (shapes from __init__): Linear(128->64), PReLU, LayerNorm(128)
    w = jax.random.normal(k5, (INPUT_DIM, HIDDEN_DIM), jnp.float32) / jnp.sqrt(INPUT_DIM)
    b = jax.random.normal(k6, (HIDDEN_DIM,), jnp.float32) * 0.01
    alpha = jnp.array(0.25, jnp.float32)                               # PReLU default
    gamma = 1.0 + 0.1 * jax.random.normal(k7, (INPUT_DIM,), jnp.float32)  # LN weight
    beta = 0.05 * jax.random.normal(k8, (INPUT_DIM,), jnp.float32)        # LN bias
    params = (gamma, beta, w, b, alpha)

    ref = reference_loss(fairwalk_keys, fairwalk_values, rgcn_emb,
                         neg_src, neg_dst, params)

    # f32-row path: tight check against the pure-JAX reference.  tile=8 at these
    # tiny demo shapes -> 2 grid steps (exercises the pipelined/tiled path);
    # real workloads would use 1024-2048 row tiles.
    loss_f32 = contrastive_loss(fairwalk_keys, fairwalk_values, rgcn_emb,
                                neg_src, neg_dst, params, tile=8,
                                row_dtype=jnp.float32)
    loss_f32 = jax.block_until_ready(loss_f32)
    assert jnp.allclose(loss_f32, ref, atol=5e-3, rtol=5e-3), (loss_f32, ref)

    # Default bf16-row path (halved HBM traffic); looser numeric tolerance.
    loss_bf16 = contrastive_loss(fairwalk_keys, fairwalk_values, rgcn_emb,
                                 neg_src, neg_dst, params, tile=8)
    loss_bf16 = jax.block_until_ready(loss_bf16)
    assert jnp.allclose(loss_bf16, ref, atol=5e-2, rtol=5e-2), (loss_bf16, ref)

    print("KERNEL_OK")
</pallas_src>

<mosaic_0001>
module attributes {stable_mosaic.version = 11 : i64} {
  func.func @_sim_kernel(%arg0: i32, %arg1: memref<8x128xf32, #tpu.memory_space<vmem>>, %arg2: memref<8x128xf32, #tpu.memory_space<vmem>>, %arg3: memref<1x128xf32, #tpu.memory_space<vmem>>, %arg4: memref<1x128xf32, #tpu.memory_space<vmem>>, %arg5: memref<128x64xf32, #tpu.memory_space<vmem>>, %arg6: memref<1x64xf32, #tpu.memory_space<vmem>>, %arg7: memref<1xf32, #tpu.memory_space<smem>>, %arg8: memref<1x1x8xf32, #tpu.memory_space<vmem>>) attributes {dimension_semantics = [#tpu.dimension_semantics<parallel>], iteration_bounds = array<i64: 2>, scalar_prefetch = 0 : i64, scratch_operands = 0 : i64, tpu.core_type = #tpu.core_type<tc>, window_params = [{transform_indices = @transform_0, window_bounds = array<i64: 8, 128>}, {transform_indices = @transform_1, window_bounds = array<i64: 8, 128>}, {pipeline_mode = #tpu.pipeline_mode<synchronous>, transform_indices = @transform_2, window_bounds = array<i64: 1, 128>}, {pipeline_mode = #tpu.pipeline_mode<synchronous>, transform_indices = @transform_3, window_bounds = array<i64: 1, 128>}, {pipeline_mode = #tpu.pipeline_mode<synchronous>, transform_indices = @transform_4, window_bounds = array<i64: 128, 64>}, {pipeline_mode = #tpu.pipeline_mode<synchronous>, transform_indices = @transform_5, window_bounds = array<i64: 1, 64>}, {transform_indices = @transform_6, window_bounds = array<i64: 1>}, {transform_indices = @transform_7, window_bounds = array<i64: 1, 1, 8>}]} {
    %c0 = arith.constant 0 : index
    %c0_0 = arith.constant 0 : index
    %0 = vector.load %arg3[%c0, %c0_0] : memref<1x128xf32, #tpu.memory_space<vmem>>, vector<1x128xf32>
    %c0_1 = arith.constant 0 : index
    %c0_2 = arith.constant 0 : index
    %1 = vector.load %arg4[%c0_1, %c0_2] : memref<1x128xf32, #tpu.memory_space<vmem>>, vector<1x128xf32>
    %c0_3 = arith.constant 0 : index
    %c0_4 = arith.constant 0 : index
    %2 = vector.load %arg5[%c0_3, %c0_4] : memref<128x64xf32, #tpu.memory_space<vmem>>, vector<128x64xf32>
    %c0_5 = arith.constant 0 : index
    %c0_6 = arith.constant 0 : index
    %3 = vector.load %arg6[%c0_5, %c0_6] : memref<1x64xf32, #tpu.memory_space<vmem>>, vector<1x64xf32>
    %c0_7 = arith.constant 0 : index
    %4 = memref.load %arg7[%c0_7] : memref<1xf32, #tpu.memory_space<smem>>
    %c0_8 = arith.constant 0 : index
    %c0_9 = arith.constant 0 : index
    %5 = vector.load %arg1[%c0_8, %c0_9] : memref<8x128xf32, #tpu.memory_space<vmem>>, vector<8x128xf32>
    %c0_10 = arith.constant 0 : index
    %c0_11 = arith.constant 0 : index
    %6 = vector.load %arg2[%c0_10, %c0_11] : memref<8x128xf32, #tpu.memory_space<vmem>>, vector<8x128xf32>
    %cst = arith.constant dense<0.000000e+00> : vector<8xf32>
    %7 = vector.multi_reduction <add>, %6, %cst [1] : vector<8x128xf32> to vector<8xf32>
    %8 = vector.shape_cast %7 : vector<8xf32> to vector<8x1xf32>
    %cst_12 = arith.constant 1.280000e+02 : f32
    %9 = vector.broadcast %cst_12 : f32 to vector<8x1xf32>
    %10 = arith.divf %8, %9 : vector<8x1xf32>
    %11 = vector.broadcast %10 : vector<8x1xf32> to vector<8x128xf32>
    %12 = arith.subf %6, %11 : vector<8x128xf32>
    %13 = arith.mulf %12, %12 : vector<8x128xf32>
    %cst_13 = arith.constant dense<0.000000e+00> : vector<8xf32>
    %14 = vector.multi_reduction <add>, %13, %cst_13 [1] : vector<8x128xf32> to vector<8xf32>
    %15 = vector.shape_cast %14 : vector<8xf32> to vector<8x1xf32>
    %cst_14 = arith.constant 1.280000e+02 : f32
    %16 = vector.broadcast %cst_14 : f32 to vector<8x1xf32>
    %17 = arith.divf %15, %16 : vector<8x1xf32>
    %cst_15 = arith.constant 9.99999974E-6 : f32
    %18 = vector.broadcast %cst_15 : f32 to vector<8x1xf32>
    %19 = arith.addf %17, %18 : vector<8x1xf32>
    %20 = math.rsqrt %19 : vector<8x1xf32>
    %21 = vector.broadcast %20 : vector<8x1xf32> to vector<8x128xf32>
    %22 = arith.mulf %12, %21 : vector<8x128xf32>
    %23 = vector.broadcast %0 : vector<1x128xf32> to vector<8x128xf32>
    %24 = arith.mulf %22, %23 : vector<8x128xf32>
    %25 = vector.broadcast %1 : vector<1x128xf32> to vector<8x128xf32>
    %26 = arith.addf %24, %25 : vector<8x128xf32>
    %cst_16 = arith.constant dense<0.000000e+00> : vector<8x64xf32>
    %27 = tpu.matmul %5, %2, %cst_16 {dimension_numbers = #tpu.dot_dimension_numbers<[1], [0], [0], [1], [0, 0, 1, 1], [], []>} : vector<8x128xf32>, vector<128x64xf32>, vector<8x64xf32> -> vector<8x64xf32>
    %28 = vector.broadcast %3 : vector<1x64xf32> to vector<8x64xf32>
    %29 = arith.addf %27, %28 : vector<8x64xf32>
    %cst_17 = arith.constant dense<0.000000e+00> : vector<8x64xf32>
    %30 = tpu.matmul %26, %2, %cst_17 {dimension_numbers = #tpu.dot_dimension_numbers<[1], [0], [0], [1], [0, 0, 1, 1], [], []>} : vector<8x128xf32>, vector<128x64xf32>, vector<8x64xf32> -> vector<8x64xf32>
    %31 = vector.broadcast %3 : vector<1x64xf32> to vector<8x64xf32>
    %32 = arith.addf %30, %31 : vector<8x64xf32>
    %cst_18 = arith.constant 0.000000e+00 : f32
    %33 = vector.broadcast %cst_18 : f32 to vector<8x64xf32>
    %34 = arith.cmpf ogt, %29, %33 : vector<8x64xf32>
    %35 = vector.broadcast %4 : f32 to vector<8x64xf32>
    %36 = arith.mulf %35, %29 : vector<8x64xf32>
    %37 = arith.select %34, %29, %36 : vector<8x64xi1>, vector<8x64xf32>
    %cst_19 = arith.constant 0.000000e+00 : f32
    %38 = vector.broadcast %cst_19 : f32 to vector<8x64xf32>
    %39 = arith.cmpf ogt, %32, %38 : vector<8x64xf32>
    %40 = vector.broadcast %4 : f32 to vector<8x64xf32>
    %41 = arith.mulf %40, %32 : vector<8x64xf32>
    %42 = arith.select %39, %32, %41 : vector<8x64xi1>, vector<8x64xf32>
    %cst_20 = arith.constant 1.000000e+00 : f32
    %43 = vector.broadcast %cst_20 : f32 to vector<1x64xf32>
    %44 = arith.mulf %37, %42 : vector<8x64xf32>
    %cst_21 = arith.constant dense<0.000000e+00> : vector<1x8xf32>
    %45 = tpu.matmul %43, %44, %cst_21 {dimension_numbers = #tpu.dot_dimension_numbers<[1], [1], [0], [0], [0, 0, 1, 0], [], []>} : vector<1x64xf32>, vector<8x64xf32>, vector<1x8xf32> -> vector<1x8xf32>
    %46 = arith.mulf %37, %37 : vector<8x64xf32>
    %cst_22 = arith.constant dense<0.000000e+00> : vector<1x8xf32>
    %47 = tpu.matmul %43, %46, %cst_22 {dimension_numbers = #tpu.dot_dimension_numbers<[1], [1], [0], [0], [0, 0, 1, 0], [], []>} : vector<1x64xf32>, vector<8x64xf32>, vector<1x8xf32> -> vector<1x8xf32>
    %48 = arith.mulf %42, %42 : vector<8x64xf32>
    %cst_23 = arith.constant dense<0.000000e+00> : vector<1x8xf32>
    %49 = tpu.matmul %43, %48, %cst_23 {dimension_numbers = #tpu.dot_dimension_numbers<[1], [1], [0], [0], [0, 0, 1, 0], [], []>} : vector<1x64xf32>, vector<8x64xf32>, vector<1x8xf32> -> vector<1x8xf32>
    %cst_24 = arith.constant 1.000000e-24 : f32
    %50 = vector.broadcast %cst_24 : f32 to vector<1x8xf32>
    %51 = arith.maximumf %47, %50 : vector<1x8xf32>
    %52 = math.rsqrt %51 : vector<1x8xf32>
    %53 = arith.mulf %45, %52 : vector<1x8xf32>
    %cst_25 = arith.constant 1.000000e-24 : f32
    %54 = vector.broadcast %cst_25 : f32 to vector<1x8xf32>
    %55 = arith.maximumf %49, %54 : vector<1x8xf32>
    %56 = math.rsqrt %55 : vector<1x8xf32>
    %57 = arith.mulf %53, %56 : vector<1x8xf32>
    %c0_26 = arith.constant 0 : index
    %c0_27 = arith.constant 0 : index
    %c0_28 = arith.constant 0 : index
    %58 = vector.load %arg8[%c0_26, %c0_27, %c0_28] : memref<1x1x8xf32, #tpu.memory_space<vmem>>, vector<1x1x8xf32>
    %59 = vector.shape_cast %58 : vector<1x1x8xf32> to vector<1x8xf32>
    %60 = vector.shape_cast %57 : vector<1x8xf32> to vector<1x1x8xf32>
    tpu.vector_store %arg8[%c0_26, %c0_27, %c0_28], %60 {strides = array<i32>} : memref<1x1x8xf32, #tpu.memory_space<vmem>>, vector<1x1x8xf32>,
    return
  }
  func.func @transform_0(%arg0: i32) -> (i32, i32) {
    %c0_i32 = arith.constant 0 : i32
    %c0_i32_0 = arith.constant 0 : i32
    return %arg0, %c0_i32 : i32, i32
  }
  func.func @transform_1(%arg0: i32) -> (i32, i32) {
    %c0_i32 = arith.constant 0 : i32
    %c0_i32_0 = arith.constant 0 : i32
    return %arg0, %c0_i32 : i32, i32
  }
  func.func @transform_2(%arg0: i32) -> (i32, i32) {
    %c0_i32 = arith.constant 0 : i32
    %c0_i32_0 = arith.constant 0 : i32
    %c0_i32_1 = arith.constant 0 : i32
    return %c0_i32, %c0_i32_0 : i32, i32
  }
  func.func @transform_3(%arg0: i32) -> (i32, i32) {
    %c0_i32 = arith.constant 0 : i32
    %c0_i32_0 = arith.constant 0 : i32
    %c0_i32_1 = arith.constant 0 : i32
    return %c0_i32, %c0_i32_0 : i32, i32
  }
  func.func @transform_4(%arg0: i32) -> (i32, i32) {
    %c0_i32 = arith.constant 0 : i32
    %c0_i32_0 = arith.constant 0 : i32
    %c0_i32_1 = arith.constant 0 : i32
    return %c0_i32, %c0_i32_0 : i32, i32
  }
  func.func @transform_5(%arg0: i32) -> (i32, i32) {
    %c0_i32 = arith.constant 0 : i32
    %c0_i32_0 = arith.constant 0 : i32
    %c0_i32_1 = arith.constant 0 : i32
    return %c0_i32, %c0_i32_0 : i32, i32
  }
  func.func @transform_6(%arg0: i32) -> i32 {
    %c0_i32 = arith.constant 0 : i32
    %c0_i32_0 = arith.constant 0 : i32
    return %c0_i32 : i32
  }
  func.func @transform_7(%arg0: i32) -> (i32, i32, i32) {
    %c0_i32 = arith.constant 0 : i32
    %c0_i32_0 = arith.constant 0 : i32
    %c0_i32_1 = arith.constant 0 : i32
    return %arg0, %c0_i32, %c0_i32_0 : i32, i32, i32
  }
}

</mosaic_0001>

<llo_original>
// kernel: tpu_custom_call.1
$region0: #{tpu_custom_call.1}
  #allocation0 [shape = 'u32[]', space=smem, size = 0x4, offset = 0x4, fixed_abs, tag = 'smem constant byte address 0x4 - core index']
  #allocation1 [shape = 'u32[144,128]{1,0:T(1,128)}', space=vmem, size = 0x12000, scoped, tag = 'internal scratch']
  #allocation2 [shape = 'f32[1]{0:T(128)S(6)}', space=smem, size = 0x200, scoped, tag = 'scoped memory for tpu_custom_call.1']
  %s0 = inlined_call_operand.vmem [shape: f32[16,128], index: 0, kind: input, shape index: {}]
  %s1 = inlined_call_operand.vmem [shape: f32[16,128], index: 1, kind: input, shape index: {}]
  %s2 = inlined_call_operand.vmem [shape: f32[1,128], index: 2, kind: input, shape index: {}]
  %s3 = inlined_call_operand.vmem [shape: f32[1,128], index: 3, kind: input, shape index: {}]
  %s4 = inlined_call_operand.vmem [shape: f32[128,64], index: 4, kind: input, shape index: {}]
  %s5 = inlined_call_operand.vmem [shape: f32[1,64], index: 5, kind: input, shape index: {}]
  %s6 = inlined_call_operand.<no memory space> [shape: f32[1], index: 6, kind: input, shape index: {}]
  %s7 = inlined_call_operand.hbm [shape: f32[2,1,8], index: 7, kind: output, shape index: {}]
  %s8 = sld [smem:[#allocation0]]
  $region61: #{tpu_custom_call.1} parent=0
    _
  %s10 = ssub.s32 1, %s8
  %s11 = scalar_select 0, %s10, %s8
  %12 = sst [smem:[#allocation2]] %s6
  $region1: #{tpu_custom_call.1} parent=0
    #allocation3 [shape = 'u8[1024]{0}', space=vmem, size = 0x400, scoped, tag = 'output window, operand 0']
    #allocation4 [shape = 's32[2]{0}', space=sflag, size = 0x8, scoped, tag = 'scoped memory for tpu_custom_call.1']
    %13 = vsyncpa [#allocation4], 0
    %s14 = scalar_lea.sflag [#allocation4], 1
    %15 = vsyncpa %s14, 0
    loop: start=0, step=1, limit=4
    $region2: #{tpu_custom_call.1} parent=1 // loop_pre_header
      _
    $region3: #{tpu_custom_call.1} parent=1 // loop_header
      %s17 = sphi 0, %s21
      %p18 = scmp.ge.s32.totalorder %s17, 4
      %s27 = sphi 0, %s29
      %s30 = sphi 0, %s27
      %s31 = sphi 0, %s30
      %s47 = sphi 0, %s31
      %s53 = sphi 0, %s55
      %s56 = sphi 0, %s53
      %s57 = sphi 0, %s56
      %s73 = sphi 0, %s57
      %s77 = sphi 0, %s77
      %s79 = sphi 0, %s77
      %s80 = sphi 0, %s79
      %s94 = sphi 0, %s80
      %s98 = sphi 0, %s98
      %s100 = sphi 0, %s98
      %s101 = sphi 0, %s100
      %s115 = sphi 0, %s101
      %s119 = sphi 0, %s119
      %s121 = sphi 0, %s119
      %s122 = sphi 0, %s121
      %s136 = sphi 0, %s122
      %s140 = sphi 0, %s140
      %s142 = sphi 0, %s140
      %s143 = sphi 0, %s142
      %s157 = sphi 0, %s143
      %s161 = sphi 0, %s161
      %s163 = sphi 0, %s161
      %s164 = sphi 0, %s163
      %s178 = sphi 0, %s164
      %s184 = sphi 0, %s186
      %s187 = sphi 0, %s184
      %s188 = sphi 0, %s187
      %s204 = sphi 0, %s188
    $region4: #{tpu_custom_call.1} parent=1 // loop_header_branch
      %20 = sbr.rel (%p18) target = $region8
    $region5: #{tpu_custom_call.1} parent=1 // loop_body
      %s22 = ssub.s32 %s17, 1
      %s23 = ssub.s32 %s17, 2
      %s24 = sadd.s32 %s17, 1
      %s25 = ssub.s32 %s17, %s24
      %p26 = scmp.eq.s32.totalorder %s25, 0
      %s28 = sadd.s32 %s27, 1
      %s29 = scalar_select %p26, %s27, %s28
      %p32 = pneg %p26
      %p33 = scmp.eq.s32.totalorder %s17, 1
      %p34 = por %p32, %p33
      %p35 = scmp.ne.s32.totalorder %s27, %s30
      %p36 = scmp.eq.s32.totalorder %s17, 0
      %p37 = por %p35, %p36
      %p38 = scmp.ne.s32.totalorder %s27, %s30
      %p39 = scmp.eq.s32.totalorder %s22, 1
      %p40 = por %p38, %p39
      %p41 = scmp.ne.s32.totalorder %s30, %s31
      %p42 = scmp.eq.s32.totalorder %s22, 0
      %p43 = por %p41, %p42
      %p44 = scmp.ne.s32.totalorder %s30, %s31
      %p45 = scmp.eq.s32.totalorder %s23, 1
      %p46 = por %p44, %p45
      %p48 = scmp.ne.s32.totalorder %s31, %s47
      %p49 = scmp.eq.s32.totalorder %s23, 0
      %p50 = por %p48, %p49
      %s51 = ssub.s32 %s17, %s24
      %p52 = scmp.eq.s32.totalorder %s51, 0
      %s54 = sadd.s32 %s53, 1
      %s55 = scalar_select %p52, %s53, %s54
      %p58 = pneg %p52
      %p59 = scmp.eq.s32.totalorder %s17, 1
      %p60 = por %p58, %p59
      %p61 = scmp.ne.s32.totalorder %s53, %s56
      %p62 = scmp.eq.s32.totalorder %s17, 0
      %p63 = por %p61, %p62
      %p64 = scmp.ne.s32.totalorder %s53, %s56
      %p65 = scmp.eq.s32.totalorder %s22, 1
      %p66 = por %p64, %p65
      %p67 = scmp.ne.s32.totalorder %s56, %s57
      %p68 = scmp.eq.s32.totalorder %s22, 0
      %p69 = por %p67, %p68
      %p70 = scmp.ne.s32.totalorder %s56, %s57
      %p71 = scmp.eq.s32.totalorder %s23, 1
      %p72 = por %p70, %p71
      %p74 = scmp.ne.s32.totalorder %s57, %s73
      %p75 = scmp.eq.s32.totalorder %s23, 0
      %p76 = por %p74, %p75
      %s78 = sadd.s32 %s77, 1
      %p81 = scmp.eq.s32.totalorder %s17, 1
      %p82 = scmp.ne.s32.totalorder %s77, %s79
      %p83 = scmp.eq.s32.totalorder %s17, 0
      %p84 = por %p82, %p83
      %p85 = scmp.ne.s32.totalorder %s77, %s79
      %p86 = scmp.eq.s32.totalorder %s22, 1
      %p87 = por %p85, %p86
      %p88 = scmp.ne.s32.totalorder %s79, %s80
      %p89 = scmp.eq.s32.totalorder %s22, 0
      %p90 = por %p88, %p89
      %p91 = scmp.ne.s32.totalorder %s79, %s80
      %p92 = scmp.eq.s32.totalorder %s23, 1
      %p93 = por %p91, %p92
      %p95 = scmp.ne.s32.totalorder %s80, %s94
      %p96 = scmp.eq.s32.totalorder %s23, 0
      %p97 = por %p95, %p96
      %s99 = sadd.s32 %s98, 1
      %p102 = scmp.eq.s32.totalorder %s17, 1
      %p103 = scmp.ne.s32.totalorder %s98, %s100
      %p104 = scmp.eq.s32.totalorder %s17, 0
      %p105 = por %p103, %p104
      %p106 = scmp.ne.s32.totalorder %s98, %s100
      %p107 = scmp.eq.s32.totalorder %s22, 1
      %p108 = por %p106, %p107
      %p109 = scmp.ne.s32.totalorder %s100, %s101
      %p110 = scmp.eq.s32.totalorder %s22, 0
      %p111 = por %p109, %p110
      %p112 = scmp.ne.s32.totalorder %s100, %s101
      %p113 = scmp.eq.s32.totalorder %s23, 1
      %p114 = por %p112, %p113
      %p116 = scmp.ne.s32.totalorder %s101, %s115
      %p117 = scmp.eq.s32.totalorder %s23, 0
      %p118 = por %p116, %p117
      %s120 = sadd.s32 %s119, 1
      %p123 = scmp.eq.s32.totalorder %s17, 1
      %p124 = scmp.ne.s32.totalorder %s119, %s121
      %p125 = scmp.eq.s32.totalorder %s17, 0
      %p126 = por %p124, %p125
      %p127 = scmp.ne.s32.totalorder %s119, %s121
      %p128 = scmp.eq.s32.totalorder %s22, 1
      %p129 = por %p127, %p128
      %p130 = scmp.ne.s32.totalorder %s121, %s122
      %p131 = scmp.eq.s32.totalorder %s22, 0
      %p132 = por %p130, %p131
      %p133 = scmp.ne.s32.totalorder %s121, %s122
      %p134 = scmp.eq.s32.totalorder %s23, 1
      %p135 = por %p133, %p134
      %p137 = scmp.ne.s32.totalorder %s122, %s136
      %p138 = scmp.eq.s32.totalorder %s23, 0
      %p139 = por %p137, %p138
      %s141 = sadd.s32 %s140, 1
      %p144 = scmp.eq.s32.totalorder %s17, 1
      %p145 = scmp.ne.s32.totalorder %s140, %s142
      %p146 = scmp.eq.s32.totalorder %s17, 0
      %p147 = por %p145, %p146
      %p148 = scmp.ne.s32.totalorder %s140, %s142
      %p149 = scmp.eq.s32.totalorder %s22, 1
      %p150 = por %p148, %p149
      %p151 = scmp.ne.s32.totalorder %s142, %s143
      %p152 = scmp.eq.s32.totalorder %s22, 0
      %p153 = por %p151, %p152
      %p154 = scmp.ne.s32.totalorder %s142, %s143
      %p155 = scmp.eq.s32.totalorder %s23, 1
      %p156 = por %p154, %p155
      %p158 = scmp.ne.s32.totalorder %s143, %s157
      %p159 = scmp.eq.s32.totalorder %s23, 0
      %p160 = por %p158, %p159
      %s162 = sadd.s32 %s161, 1
      %p165 = scmp.eq.s32.totalorder %s17, 1
      %p166 = scmp.ne.s32.totalorder %s161, %s163
      %p167 = scmp.eq.s32.totalorder %s17, 0
      %p168 = por %p166, %p167
      %p169 = scmp.ne.s32.totalorder %s161, %s163
      %p170 = scmp.eq.s32.totalorder %s22, 1
      %p171 = por %p169, %p170
      %p172 = scmp.ne.s32.totalorder %s163, %s164
      %p173 = scmp.eq.s32.totalorder %s22, 0
      %p174 = por %p172, %p173
      %p175 = scmp.ne.s32.totalorder %s163, %s164
      %p176 = scmp.eq.s32.totalorder %s23, 1
      %p177 = por %p175, %p176
      %p179 = scmp.ne.s32.totalorder %s164, %s178
      %p180 = scmp.eq.s32.totalorder %s23, 0
      %p181 = por %p179, %p180
      %s182 = ssub.s32 %s17, %s24
      %p183 = scmp.eq.s32.totalorder %s182, 0
      %s185 = sadd.s32 %s184, 1
      %s186 = scalar_select %p183, %s184, %s185
      %p189 = pneg %p183
      %p190 = scmp.eq.s32.totalorder %s17, 1
      %p191 = por %p189, %p190
      %p192 = scmp.ne.s32.totalorder %s184, %s187
      %p193 = scmp.eq.s32.totalorder %s17, 0
      %p194 = por %p192, %p193
      %p195 = scmp.ne.s32.totalorder %s184, %s187
      %p196 = scmp.eq.s32.totalorder %s22, 1
      %p197 = por %p195, %p196
      %p198 = scmp.ne.s32.totalorder %s187, %s188
      %p199 = scmp.eq.s32.totalorder %s22, 0
      %p200 = por %p198, %p199
      %p201 = scmp.ne.s32.totalorder %s187, %s188
      %p202 = scmp.eq.s32.totalorder %s23, 1
      %p203 = por %p201, %p202
      %p205 = scmp.ne.s32.totalorder %s188, %s204
      %p206 = scmp.eq.s32.totalorder %s23, 0
      %p207 = por %p205, %p206
      %p208 = scmp.le.s32.totalorder 1, %s17
      %p209 = scmp.lt.s32.totalorder %s17, 3
      %p210 = pnand %p208, %p209
      %p211 = pneg %p210
      // Predicated region
      $region9: #{tpu_custom_call.1} parent=5 // pred_check
        _
      $region10: #{tpu_custom_call.1} parent=5 // pred_check_branch
        %213 = sbr.rel (%p210) target = $region12
      $region11: #{tpu_custom_call.1} parent=5 // pred_region
        %s214 = ssub.s32 %s17, 1
        // Predicated region
        $region13: #{tpu_custom_call.1} parent=11 // pred_check
          %p215 = pneg %p90
        $region14: #{tpu_custom_call.1} parent=11 // pred_check_branch
          %217 = sbr.rel (%p215) target = $region16
        $region15: #{tpu_custom_call.1} parent=11 // pred_region
          _
        $region16: #{tpu_custom_call.1} parent=11 // pred_fallthru
          _
        // Predicated region
        $region17: #{tpu_custom_call.1} parent=11 // pred_check
          %p218 = pneg %p111
        $region18: #{tpu_custom_call.1} parent=11 // pred_check_branch
          %220 = sbr.rel (%p218) target = $region20
        $region19: #{tpu_custom_call.1} parent=11 // pred_region
          _
        $region20: #{tpu_custom_call.1} parent=11 // pred_fallthru
          _
        // Predicated region
        $region21: #{tpu_custom_call.1} parent=11 // pred_check
          %p221 = pneg %p132
        $region22: #{tpu_custom_call.1} parent=11 // pred_check_branch
          %223 = sbr.rel (%p221) target = $region24
        $region23: #{tpu_custom_call.1} parent=11 // pred_region
          _
        $region24: #{tpu_custom_call.1} parent=11 // pred_fallthru
          _
        // Predicated region
        $region25: #{tpu_custom_call.1} parent=11 // pred_check
          %p224 = pneg %p153
        $region26: #{tpu_custom_call.1} parent=11 // pred_check_branch
          %226 = sbr.rel (%p224) target = $region28
        $region27: #{tpu_custom_call.1} parent=11 // pred_region
          _
        $region28: #{tpu_custom_call.1} parent=11 // pred_fallthru
          _
        // Predicated region
        $region29: #{tpu_custom_call.1} parent=11 // pred_check
          %p227 = pneg %p174
        $region30: #{tpu_custom_call.1} parent=11 // pred_check_branch
          %229 = sbr.rel (%p227) target = $region32
        $region31: #{tpu_custom_call.1} parent=11 // pred_region
          _
        $region32: #{tpu_custom_call.1} parent=11 // pred_fallthru
          _
      $region12: #{tpu_custom_call.1} parent=5 // pred_fallthru
        _
      %p230 = scmp.lt.s32.totalorder %s17, 2
      // Predicated region
      $region33: #{tpu_custom_call.1} parent=5 // pred_check
        %p231 = pneg %p230
      $region34: #{tpu_custom_call.1} parent=5 // pred_check_branch
        %233 = sbr.rel (%p231) target = $region36
      $region35: #{tpu_custom_call.1} parent=5 // pred_region
        // Predicated region
        $region37: #{tpu_custom_call.1} parent=35 // pred_check
          %p234 = pneg %p37
        $region38: #{tpu_custom_call.1} parent=35 // pred_check_branch
          %236 = sbr.rel (%p234) target = $region40
        $region39: #{tpu_custom_call.1} parent=35 // pred_region
          %p237 = scmp.lt.s32.totalorder %s17, 1
          %s238 = scalar_select %p237, %s17, 1
          %s239 = smul.addr %s238, 8
          %s240 = scalar_lea.vmem %s0, %s239
        $region40: #{tpu_custom_call.1} parent=35 // pred_fallthru
          _
        // Predicated region
        $region41: #{tpu_custom_call.1} parent=35 // pred_check
          %p241 = pneg %p63
        $region42: #{tpu_custom_call.1} parent=35 // pred_check_branch
          %243 = sbr.rel (%p241) target = $region44
        $region43: #{tpu_custom_call.1} parent=35 // pred_region
          %p244 = scmp.lt.s32.totalorder %s17, 1
          %s245 = scalar_select %p244, %s17, 1
          %s246 = smul.addr %s245, 8
          %s247 = scalar_lea.vmem %s1, %s246
        $region44: #{tpu_custom_call.1} parent=35 // pred_fallthru
          _
      $region36: #{tpu_custom_call.1} parent=5 // pred_fallthru
        _
      %p248 = scmp.le.s32.totalorder 1, %s17
      %p249 = scmp.lt.s32.totalorder %s17, 3
      %p250 = pnand %p248, %p249
      %p251 = pneg %p250
      // Predicated region
      $region45: #{tpu_custom_call.1} parent=5 // pred_check
        _
      $region46: #{tpu_custom_call.1} parent=5 // pred_check_branch
        %253 = sbr.rel (%p250) target = $region48
      $region47: #{tpu_custom_call.1} parent=5 // pred_region
        %s254 = ssub.s32 %s17, 1
        %p255 = scmp.lt.s32.totalorder %s22, 1
        %s256 = scalar_select %p255, %s22, 1
        %s257 = smul.addr %s256, 8
        %s258 = scalar_lea.vmem %s0, %s257
        %p259 = pneg %p43
        %p260 = pneg %p40
        %p261 = scmp.lt.s32.totalorder %s22, 1
        %s262 = scalar_select %p261, %s22, 1
        %s263 = smul.addr %s262, 8
        %s264 = scalar_lea.vmem %s1, %s263
        %p265 = pneg %p69
        %p266 = pneg %p66
        %p267 = pneg %p90
        %p268 = pneg %p87
        %p269 = pneg %p111
        %p270 = pneg %p108
        %p271 = pneg %p132
        %p272 = pneg %p129
        %p273 = pneg %p153
        %p274 = pneg %p150
        %p275 = pneg %p174
        %p276 = pneg %p171
        %p277 = pneg %p200
        %p278 = pneg %p197
        %s279 = sand.u32 %s187, 1
        %s280 = scalar_lea.sflag [#allocation4], %s279
        %s281 = sand.u32 %s187, 1
        %s282 = scalar_lea.vmem [#allocation3], %s281
        %p283 = scmp.lt.s32.totalorder %s22, 1
        %s284 = scalar_select %p283, %s22, 1
        %s285 = smul.addr %s284, 8
        %s286 = scalar_lea.vmem %s0, %s285
        %p287 = scmp.lt.s32.totalorder %s22, 1
        %s288 = scalar_select %p287, %s22, 1
        %s289 = smul.addr %s288, 8
        %s290 = scalar_lea.vmem %s1, %s289
        %v291 = vld [vmem:[%s2] sm:$0x1]
        %v292 = vld [vmem:[%s3] sm:$0x1]
        %v293 = vld [vmem:[%s4] sm:$0xff]
        %v294 = vld [vmem:[%s4 + $0x8] sm:$0xff]
        %v295 = vld [vmem:[%s4 + $0x10] sm:$0xff]
        %v296 = vld [vmem:[%s4 + $0x18] sm:$0xff]
        %v297 = vld [vmem:[%s4 + $0x20] sm:$0xff]
        %v298 = vld [vmem:[%s4 + $0x28] sm:$0xff]
        %v299 = vld [vmem:[%s4 + $0x30] sm:$0xff]
        %v300 = vld [vmem:[%s4 + $0x38] sm:$0xff]
        %v301 = vld [vmem:[%s4 + $0x40] sm:$0xff]
        %v302 = vld [vmem:[%s4 + $0x48] sm:$0xff]
        %v303 = vld [vmem:[%s4 + $0x50] sm:$0xff]
        %v304 = vld [vmem:[%s4 + $0x58] sm:$0xff]
        %v305 = vld [vmem:[%s4 + $0x60] sm:$0xff]
        %v306 = vld [vmem:[%s4 + $0x68] sm:$0xff]
        %v307 = vld [vmem:[%s4 + $0x70] sm:$0xff]
        %v308 = vld [vmem:[%s4 + $0x78] sm:$0xff]
        %v309 = vld [vmem:[%s5] sm:$0x1]
        %s310 = sld [smem:[#allocation2]]
        %v311 = vld [vmem:[%s286] sm:$0xff]
        %v312 = vld [vmem:[%s290] sm:$0xff]
        %313 = vadd.xlane.f32.xlu0 %v312
        %v314 = vpop.xlane.xlu0 %313
        %v315 = vrcp.pop 128.0
        %v316 = vmul.f32 %v314, %v315
        %v317 = vsub.f32 %v312, %v316
        %v318 = vmul.f32 %v317, %v317
        %319 = vadd.xlane.f32.xlu0 %v318
        %v320 = vpop.xlane.xlu0 %319
        %v321 = vmul.f32 %v320, %v315
        %v322 = vadd.f32 %v321, 1e-05
        %v323 = vrsqrt.pop %v322
        %v324 = vmul.f32 %v317, %v323
        %v326 = vlaneseq
        %v327 = vshrl.u32 %v326, 7
        %v328 = vsub.s32 0, %v327
        %v329 = vrot.slane %v291, %v328
        %v331 = vmul.f32 %v324, %v329
        %v333 = vlaneseq
        %v334 = vshrl.u32 %v333, 7
        %v335 = vsub.s32 0, %v334
        %v336 = vrot.slane %v292, %v335
        %v338 = vadd.f32 %v331, %v336
        %v340 = vlaneseq
        %v341 = vshrl.u32 %v340, 7
        %v342 = vsub.s32 0, %v341
        %v343 = vrot.slane %v309, %v342
        %345 = vmatprep.subr.mxu0 0.0
        %346 = vmatpush1.msra.mxu0 %v293
        %347 = vmatprep.subr.mxu0 0.0
        %348 = vmatpush1.msra.mxu0 %v294
        %349 = vmatprep.subr.mxu0 0.0
        %350 = vmatpush1.msra.mxu0 %v295
        %351 = vmatprep.subr.mxu0 0.0
        %352 = vmatpush1.msra.mxu0 %v296
        %353 = vmatprep.subr.mxu0 0.0
        %354 = vmatpush1.msra.mxu0 %v297
        %355 = vmatprep.subr.mxu0 0.0
        %356 = vmatpush1.msra.mxu0 %v298
        %357 = vmatprep.subr.mxu0 0.0
        %358 = vmatpush1.msra.mxu0 %v299
        %359 = vmatprep.subr.mxu0 0.0
        %360 = vmatpush1.msra.mxu0 %v300
        %361 = vmatprep.subr.mxu0 0.0
        %362 = vmatpush1.msra.mxu0 %v301
        %363 = vmatprep.subr.mxu0 0.0
        %364 = vmatpush1.msra.mxu0 %v302
        %365 = vmatprep.subr.mxu0 0.0
        %366 = vmatpush1.msra.mxu0 %v303
        %367 = vmatprep.subr.mxu0 0.0
        %368 = vmatpush1.msra.mxu0 %v304
        %369 = vmatprep.subr.mxu0 0.0
        %370 = vmatpush1.msra.mxu0 %v305
        %371 = vmatprep.subr.mxu0 0.0
        %372 = vmatpush1.msra.mxu0 %v306
        %373 = vmatprep.subr.mxu0 0.0
        %374 = vmatpush1.msra.mxu0 %v307
        %375 = vmatprep.subr.mxu0 0.0
        %376 = vmatpush1.msra.mxu0 %v308
        %377 = vmatprep.subr.mxu0 0.0
        %378 = vmatpush1.msra.mxu0 0.0
        %379 = vmatprep.subr.mxu0 0.0
        %380 = vmatpush1.msra.mxu0 0.0
        %381 = vmatprep.subr.mxu0 0.0
        %382 = vmatpush1.msra.mxu0 0.0
        %383 = vmatprep.subr.mxu0 0.0
        %384 = vmatpush1.msra.mxu0 0.0
        %385 = vmatprep.subr.mxu0 0.0
        %386 = vmatpush1.msra.mxu0 0.0
        %387 = vmatprep.subr.mxu0 0.0
        %388 = vmatpush1.msra.mxu0 0.0
        %389 = vmatprep.subr.mxu0 0.0
        %390 = vmatpush1.msra.mxu0 0.0
        %391 = vmatprep.subr.mxu0 0.0
        %392 = vmatpush1.msra.mxu0 0.0
        %393 = vmatprep.subr.mxu0 0.0
        %394 = vmatpush1.msra.mxu0 0.0
        %395 = vmatprep.subr.mxu0 0.0
        %396 = vmatpush1.msra.mxu0 0.0
        %397 = vmatprep.subr.mxu0 0.0
        %398 = vmatpush1.msra.mxu0 0.0
        %399 = vmatprep.subr.mxu0 0.0
        %400 = vmatpush1.msra.mxu0 0.0
        %401 = vmatprep.subr.mxu0 0.0
        %402 = vmatpush1.msra.mxu0 0.0
        %403 = vmatprep.subr.mxu0 0.0
        %404 = vmatpush1.msra.mxu0 0.0
        %405 = vmatprep.subr.mxu0 0.0
        %406 = vmatpush1.msra.mxu0 0.0
        %407 = vmatprep.subr.mxu0 0.0
        %408 = vmatpush1.msra.mxu0 0.0
        %409 = vmatprep.mubr.f32.mxu0 0.0
        %410 = vmatmul.mubr.f32.gmra.mrb[0].mxu0 %v311
        %v411 = vpop.f32.mrb[0].mxu0
        %v412 = vadd.f32 %v343, %v411
        %v413 = vpop.f32.mrb[0].mxu0
        %414 = vdwg.mxu0
        %415 = vmatprep.subr.mxu0 0.0
        %416 = vmatpush1.msra.mxu0 %v293
        %417 = vmatprep.subr.mxu0 0.0
        %418 = vmatpush1.msra.mxu0 %v294
        %419 = vmatprep.subr.mxu0 0.0
        %420 = vmatpush1.msra.mxu0 %v295
        %421 = vmatprep.subr.mxu0 0.0
        %422 = vmatpush1.msra.mxu0 %v296
        %423 = vmatprep.subr.mxu0 0.0
        %424 = vmatpush1.msra.mxu0 %v297
        %425 = vmatprep.subr.mxu0 0.0
        %426 = vmatpush1.msra.mxu0 %v298
        %427 = vmatprep.subr.mxu0 0.0
        %428 = vmatpush1.msra.mxu0 %v299
        %429 = vmatprep.subr.mxu0 0.0
        %430 = vmatpush1.msra.mxu0 %v300
        %431 = vmatprep.subr.mxu0 0.0
        %432 = vmatpush1.msra.mxu0 %v301
        %433 = vmatprep.subr.mxu0 0.0
        %434 = vmatpush1.msra.mxu0 %v302
        %435 = vmatprep.subr.mxu0 0.0
        %436 = vmatpush1.msra.mxu0 %v303
        %437 = vmatprep.subr.mxu0 0.0
        %438 = vmatpush1.msra.mxu0 %v304
        %439 = vmatprep.subr.mxu0 0.0
        %440 = vmatpush1.msra.mxu0 %v305
        %441 = vmatprep.subr.mxu0 0.0
        %442 = vmatpush1.msra.mxu0 %v306
        %443 = vmatprep.subr.mxu0 0.0
        %444 = vmatpush1.msra.mxu0 %v307
        %445 = vmatprep.subr.mxu0 0.0
        %446 = vmatpush1.msra.mxu0 %v308
        %447 = vmatprep.subr.mxu0 0.0
        %448 = vmatpush1.msra.mxu0 0.0
        %449 = vmatprep.subr.mxu0 0.0
        %450 = vmatpush1.msra.mxu0 0.0
        %451 = vmatprep.subr.mxu0 0.0
        %452 = vmatpush1.msra.mxu0 0.0
        %453 = vmatprep.subr.mxu0 0.0
        %454 = vmatpush1.msra.mxu0 0.0
        %455 = vmatprep.subr.mxu0 0.0
        %456 = vmatpush1.msra.mxu0 0.0
        %457 = vmatprep.subr.mxu0 0.0
        %458 = vmatpush1.msra.mxu0 0.0
        %459 = vmatprep.subr.mxu0 0.0
        %460 = vmatpush1.msra.mxu0 0.0
        %461 = vmatprep.subr.mxu0 0.0
        %462 = vmatpush1.msra.mxu0 0.0
        %463 = vmatprep.subr.mxu0 0.0
        %464 = vmatpush1.msra.mxu0 0.0
        %465 = vmatprep.subr.mxu0 0.0
        %466 = vmatpush1.msra.mxu0 0.0
        %467 = vmatprep.subr.mxu0 0.0
        %468 = vmatpush1.msra.mxu0 0.0
        %469 = vmatprep.subr.mxu0 0.0
        %470 = vmatpush1.msra.mxu0 0.0
        %471 = vmatprep.subr.mxu0 0.0
        %472 = vmatpush1.msra.mxu0 0.0
        %473 = vmatprep.subr.mxu0 0.0
        %474 = vmatpush1.msra.mxu0 0.0
        %475 = vmatprep.subr.mxu0 0.0
        %476 = vmatpush1.msra.mxu0 0.0
        %477 = vmatprep.subr.mxu0 0.0
        %478 = vmatpush1.msra.mxu0 0.0
        %479 = vmatprep.mubr.f32.mxu0 0.0
        %480 = vmatmul.mubr.f32.gmra.mrb[0].mxu0 %v338
        %v481 = vpop.f32.mrb[0].mxu0
        %v482 = vadd.f32 %v343, %v481
        %v483 = vpop.f32.mrb[0].mxu0
        %484 = vdwg.mxu0
        %vm485 = vcmp.gt.f32.partialorder %v412, 0.0
        %v486 = vstv %s310
        %v487 = vmul.f32 %v486, %v412
        %v488 = vsel %vm485, %v412, %v487
        %vm489 = vcmp.gt.f32.partialorder %v482, 0.0
        %v490 = vmul.f32 %v486, %v482
        %v491 = vsel %vm489, %v482, %v490
        %v492 = vmul.f32 %v488, %v491
        %vm493 = vcmask 523264
        %v495 = vsel %vm493, 1.0, 0
        %v498 = vsel %vm493, %v492, 0
        %500 = vmatprep.subr.mxu0 0.0
        %501 = vmatpush1.xpose.msra.mxu0 %v498
        %502 = vmatprep.subr.mxu0 0.0
        %503 = vmatpush1.xpose.msra.mxu0 0.0
        %504 = vmatprep.subr.mxu0 0.0
        %505 = vmatpush1.xpose.msra.mxu0 0.0
        %506 = vmatprep.subr.mxu0 0.0
        %507 = vmatpush1.xpose.msra.mxu0 0.0
        %508 = vmatprep.subr.mxu0 0.0
        %509 = vmatpush1.xpose.msra.mxu0 0.0
        %510 = vmatprep.subr.mxu0 0.0
        %511 = vmatpush1.xpose.msra.mxu0 0.0
        %512 = vmatprep.subr.mxu0 0.0
        %513 = vmatpush1.xpose.msra.mxu0 0.0
        %514 = vmatprep.subr.mxu0 0.0
        %515 = vmatpush1.xpose.msra.mxu0 0.0
        %516 = vmatprep.subr.mxu0 0.0
        %517 = vmatpush1.xpose.msra.mxu0 0.0
        %518 = vmatprep.subr.mxu0 0.0
        %519 = vmatpush1.xpose.msra.mxu0 0.0
        %520 = vmatprep.subr.mxu0 0.0
        %521 = vmatpush1.xpose.msra.mxu0 0.0
        %522 = vmatprep.subr.mxu0 0.0
        %523 = vmatpush1.xpose.msra.mxu0 0.0
        %524 = vmatprep.subr.mxu0 0.0
        %525 = vmatpush1.xpose.msra.mxu0 0.0
        %526 = vmatprep.subr.mxu0 0.0
        %527 = vmatpush1.xpose.msra.mxu0 0.0
        %528 = vmatprep.subr.mxu0 0.0
        %529 = vmatpush1.xpose.msra.mxu0 0.0
        %530 = vmatprep.subr.mxu0 0.0
        %531 = vmatpush1.xpose.msra.mxu0 0.0
        %532 = vmatprep.subr.mxu0 0.0
        %533 = vmatpush1.xpose.msra.mxu0 0.0
        %534 = vmatprep.subr.mxu0 0.0
        %535 = vmatpush1.xpose.msra.mxu0 0.0
        %536 = vmatprep.subr.mxu0 0.0
        %537 = vmatpush1.xpose.msra.mxu0 0.0
        %538 = vmatprep.subr.mxu0 0.0
        %539 = vmatpush1.xpose.msra.mxu0 0.0
        %540 = vmatprep.subr.mxu0 0.0
        %541 = vmatpush1.xpose.msra.mxu0 0.0
        %542 = vmatprep.subr.mxu0 0.0
        %543 = vmatpush1.xpose.msra.mxu0 0.0
        %544 = vmatprep.subr.mxu0 0.0
        %545 = vmatpush1.xpose.msra.mxu0 0.0
        %546 = vmatprep.subr.mxu0 0.0
        %547 = vmatpush1.xpose.msra.mxu0 0.0
        %548 = vmatprep.subr.mxu0 0.0
        %549 = vmatpush1.xpose.msra.mxu0 0.0
        %550 = vmatprep.subr.mxu0 0.0
        %551 = vmatpush1.xpose.msra.mxu0 0.0
        %552 = vmatprep.subr.mxu0 0.0
        %553 = vmatpush1.xpose.msra.mxu0 0.0
        %554 = vmatprep.subr.mxu0 0.0
        %555 = vmatpush1.xpose.msra.mxu0 0.0
        %556 = vmatprep.subr.mxu0 0.0
        %557 = vmatpush1.xpose.msra.mxu0 0.0
        %558 = vmatprep.subr.mxu0 0.0
        %559 = vmatpush1.xpose.msra.mxu0 0.0
        %560 = vmatprep.subr.mxu0 0.0
        %561 = vmatpush1.xpose.msra.mxu0 0.0
        %562 = vmatprep.subr.mxu0 0.0
        %563 = vmatpush1.xpose.msra.mxu0 0.0
        %564 = vmatprep.mubr.f32.mxu0 0.0
        %565 = vmatmul.mubr.f32.gmra.mrb[0].mxu0 %v495
        %v566 = vpop.f32.mrb[0].mxu0
        %v567 = vadd.f32 0.0, %v566
        %v568 = vpop.f32.mrb[0].mxu0
        %569 = vdwg.mxu0
        %v570 = vmul.f32 %v488, %v488
        %v572 = vsel %vm493, %v570, 0
        %574 = vmatprep.subr.mxu0 0.0
        %575 = vmatpush1.xpose.msra.mxu0 %v572
        %576 = vmatprep.subr.mxu0 0.0
        %577 = vmatpush1.xpose.msra.mxu0 0.0
        %578 = vmatprep.subr.mxu0 0.0
        %579 = vmatpush1.xpose.msra.mxu0 0.0
        %580 = vmatprep.subr.mxu0 0.0
        %581 = vmatpush1.xpose.msra.mxu0 0.0
        %582 = vmatprep.subr.mxu0 0.0
        %583 = vmatpush1.xpose.msra.mxu0 0.0
        %584 = vmatprep.subr.mxu0 0.0
        %585 = vmatpush1.xpose.msra.mxu0 0.0
        %586 = vmatprep.subr.mxu0 0.0
        %587 = vmatpush1.xpose.msra.mxu0 0.0
        %588 = vmatprep.subr.mxu0 0.0
        %589 = vmatpush1.xpose.msra.mxu0 0.0
        %590 = vmatprep.subr.mxu0 0.0
        %591 = vmatpush1.xpose.msra.mxu0 0.0
        %592 = vmatprep.subr.mxu0 0.0
        %593 = vmatpush1.xpose.msra.mxu0 0.0
        %594 = vmatprep.subr.mxu0 0.0
        %595 = vmatpush1.xpose.msra.mxu0 0.0
        %596 = vmatprep.subr.mxu0 0.0
        %597 = vmatpush1.xpose.msra.mxu0 0.0
        %598 = vmatprep.subr.mxu0 0.0
        %599 = vmatpush1.xpose.msra.mxu0 0.0
        %600 = vmatprep.subr.mxu0 0.0
        %601 = vmatpush1.xpose.msra.mxu0 0.0
        %602 = vmatprep.subr.mxu0 0.0
        %603 = vmatpush1.xpose.msra.mxu0 0.0
        %604 = vmatprep.subr.mxu0 0.0
        %605 = vmatpush1.xpose.msra.mxu0 0.0
        %606 = vmatprep.subr.mxu0 0.0
        %607 = vmatpush1.xpose.msra.mxu0 0.0
        %608 = vmatprep.subr.mxu0 0.0
        %609 = vmatpush1.xpose.msra.mxu0 0.0
        %610 = vmatprep.subr.mxu0 0.0
        %611 = vmatpush1.xpose.msra.mxu0 0.0
        %612 = vmatprep.subr.mxu0 0.0
        %613 = vmatpush1.xpose.msra.mxu0 0.0
        %614 = vmatprep.subr.mxu0 0.0
        %615 = vmatpush1.xpose.msra.mxu0 0.0
        %616 = vmatprep.subr.mxu0 0.0
        %617 = vmatpush1.xpose.msra.mxu0 0.0
        %618 = vmatprep.subr.mxu0 0.0
        %619 = vmatpush1.xpose.msra.mxu0 0.0
        %620 = vmatprep.subr.mxu0 0.0
        %621 = vmatpush1.xpose.msra.mxu0 0.0
        %622 = vmatprep.subr.mxu0 0.0
        %623 = vmatpush1.xpose.msra.mxu0 0.0
        %624 = vmatprep.subr.mxu0 0.0
        %625 = vmatpush1.xpose.msra.mxu0 0.0
        %626 = vmatprep.subr.mxu0 0.0
        %627 = vmatpush1.xpose.msra.mxu0 0.0
        %628 = vmatprep.subr.mxu0 0.0
        %629 = vmatpush1.xpose.msra.mxu0 0.0
        %630 = vmatprep.subr.mxu0 0.0
        %631 = vmatpush1.xpose.msra.mxu0 0.0
        %632 = vmatprep.subr.mxu0 0.0
        %633 = vmatpush1.xpose.msra.mxu0 0.0
        %634 = vmatprep.subr.mxu0 0.0
        %635 = vmatpush1.xpose.msra.mxu0 0.0
        %636 = vmatprep.subr.mxu0 0.0
        %637 = vmatpush1.xpose.msra.mxu0 0.0
        %638 = vmatprep.mubr.f32.mxu0 0.0
        %639 = vmatmul.mubr.f32.gmra.mrb[0].mxu0 %v495
        %v640 = vpop.f32.mrb[0].mxu0
        %v641 = vadd.f32 0.0, %v640
        %v642 = vpop.f32.mrb[0].mxu0
        %643 = vdwg.mxu0
        %v644 = vmul.f32 %v491, %v491
        %v646 = vsel %vm493, %v644, 0
        %648 = vmatprep.subr.mxu0 0.0
        %649 = vmatpush1.xpose.msra.mxu0 %v646
        %650 = vmatprep.subr.mxu0 0.0
        %651 = vmatpush1.xpose.msra.mxu0 0.0
        %652 = vmatprep.subr.mxu0 0.0
        %653 = vmatpush1.xpose.msra.mxu0 0.0
        %654 = vmatprep.subr.mxu0 0.0
        %655 = vmatpush1.xpose.msra.mxu0 0.0
        %656 = vmatprep.subr.mxu0 0.0
        %657 = vmatpush1.xpose.msra.mxu0 0.0
        %658 = vmatprep.subr.mxu0 0.0
        %659 = vmatpush1.xpose.msra.mxu0 0.0
        %660 = vmatprep.subr.mxu0 0.0
        %661 = vmatpush1.xpose.msra.mxu0 0.0
        %662 = vmatprep.subr.mxu0 0.0
        %663 = vmatpush1.xpose.msra.mxu0 0.0
        %664 = vmatprep.subr.mxu0 0.0
        %665 = vmatpush1.xpose.msra.mxu0 0.0
        %666 = vmatprep.subr.mxu0 0.0
        %667 = vmatpush1.xpose.msra.mxu0 0.0
        %668 = vmatprep.subr.mxu0 0.0
        %669 = vmatpush1.xpose.msra.mxu0 0.0
        %670 = vmatprep.subr.mxu0 0.0
        %671 = vmatpush1.xpose.msra.mxu0 0.0
        %672 = vmatprep.subr.mxu0 0.0
        %673 = vmatpush1.xpose.msra.mxu0 0.0
        %674 = vmatprep.subr.mxu0 0.0
        %675 = vmatpush1.xpose.msra.mxu0 0.0
        %676 = vmatprep.subr.mxu0 0.0
        %677 = vmatpush1.xpose.msra.mxu0 0.0
        %678 = vmatprep.subr.mxu0 0.0
        %679 = vmatpush1.xpose.msra.mxu0 0.0
        %680 = vmatprep.subr.mxu0 0.0
        %681 = vmatpush1.xpose.msra.mxu0 0.0
        %682 = vmatprep.subr.mxu0 0.0
        %683 = vmatpush1.xpose.msra.mxu0 0.0
        %684 = vmatprep.subr.mxu0 0.0
        %685 = vmatpush1.xpose.msra.mxu0 0.0
        %686 = vmatprep.subr.mxu0 0.0
        %687 = vmatpush1.xpose.msra.mxu0 0.0
        %688 = vmatprep.subr.mxu0 0.0
        %689 = vmatpush1.xpose.msra.mxu0 0.0
        %690 = vmatprep.subr.mxu0 0.0
        %691 = vmatpush1.xpose.msra.mxu0 0.0
        %692 = vmatprep.subr.mxu0 0.0
        %693 = vmatpush1.xpose.msra.mxu0 0.0
        %694 = vmatprep.subr.mxu0 0.0
        %695 = vmatpush1.xpose.msra.mxu0 0.0
        %696 = vmatprep.subr.mxu0 0.0
        %697 = vmatpush1.xpose.msra.mxu0 0.0
        %698 = vmatprep.subr.mxu0 0.0
        %699 = vmatpush1.xpose.msra.mxu0 0.0
        %700 = vmatprep.subr.mxu0 0.0
        %701 = vmatpush1.xpose.msra.mxu0 0.0
        %702 = vmatprep.subr.mxu0 0.0
        %703 = vmatpush1.xpose.msra.mxu0 0.0
        %704 = vmatprep.subr.mxu0 0.0
        %705 = vmatpush1.xpose.msra.mxu0 0.0
        %706 = vmatprep.subr.mxu0 0.0
        %707 = vmatpush1.xpose.msra.mxu0 0.0
        %708 = vmatprep.subr.mxu0 0.0
        %709 = vmatpush1.xpose.msra.mxu0 0.0
        %710 = vmatprep.subr.mxu0 0.0
        %711 = vmatpush1.xpose.msra.mxu0 0.0
        %712 = vmatprep.mubr.f32.mxu0 0.0
        %713 = vmatmul.mubr.f32.gmra.mrb[0].mxu0 %v495
        %v714 = vpop.f32.mrb[0].mxu0
        %v715 = vadd.f32 0.0, %v714
        %v716 = vpop.f32.mrb[0].mxu0
        %717 = vdwg.mxu0
        %v718 = vmax.f32 %v641, 1e-24
        %v719 = vrsqrt.pop %v718
        %v720 = vmul.f32 %v567, %v719
        %v721 = vmax.f32 %v715, 1e-24
        %v722 = vrsqrt.pop %v721
        %v723 = vmul.f32 %v720, %v722
        %vm724 = vcmask 57344
        %725 = vst.msk [vmem:[%s282] sm:$0x1] %vm724, %v723
        %s726 = sand.u32 %s187, 1
        %s727 = scalar_lea.sflag [#allocation4], %s726
        %s728 = sand.u32 %s187, 1
        %s729 = scalar_lea.vmem [#allocation3], %s728
        // Predicated region
        $region49: #{tpu_custom_call.1} parent=47 // pred_check
          %p730 = pneg %p197
        $region50: #{tpu_custom_call.1} parent=47 // pred_check_branch
          %732 = sbr.rel (%p730) target = $region52
        $region51: #{tpu_custom_call.1} parent=47 // pred_region
          %s734 = ssub.s32 16, 16
          %735 = vsyncadd %s727, %s734
          %s736 = smul.addr %s22, 16
          %s737 = scalar_lea.hbm %s7, %s736
          %s739 = sshll.u32 %s729, 4
          %s740 = int_to_ptr.vmem [resolvable:$true] %s739
          %742 = dma.vmem_to_hbm [thread:$0]  %s740, 16, %s737, %s727
        $region52: #{tpu_custom_call.1} parent=47 // pred_fallthru
          _
      $region48: #{tpu_custom_call.1} parent=5 // pred_fallthru
        _
      %p743 = scmp.le.s32.totalorder 2, %s17
      // Predicated region
      $region53: #{tpu_custom_call.1} parent=5 // pred_check
        %p744 = pneg %p743
      $region54: #{tpu_custom_call.1} parent=5 // pred_check_branch
        %746 = sbr.rel (%p744) target = $region56
      $region55: #{tpu_custom_call.1} parent=5 // pred_region
        %s747 = ssub.s32 %s17, 2
        // Predicated region
        $region57: #{tpu_custom_call.1} parent=55 // pred_check
          %p748 = pneg %p203
        $region58: #{tpu_custom_call.1} parent=55 // pred_check_branch
          %750 = sbr.rel (%p748) target = $region60
        $region59: #{tpu_custom_call.1} parent=55 // pred_region
          %s751 = sand.u32 %s188, 1
          %s752 = scalar_lea.sflag [#allocation4], %s751
          %s753 = sand.u32 %s188, 1
          %s754 = scalar_lea.vmem [#allocation3], %s753
          %755 = dma.done %s752, 16
        $region60: #{tpu_custom_call.1} parent=55 // pred_fallthru
          _
      $region56: #{tpu_custom_call.1} parent=5 // pred_fallthru
        _
    $region6: #{tpu_custom_call.1} parent=1 // loop_footer
      %s21 = sadd.s32 1, %s17
    $region7: #{tpu_custom_call.1} parent=1 // loop_footer_branch
      %16 = sbr.rel target = $region3
    $region8: #{tpu_custom_call.1} parent=1 // loop_exit
      _
    %756 = vsyncpa [#allocation4], 1
    %s757 = scalar_lea.sflag [#allocation4], 1
    %758 = vsyncpa %s757, 1

</llo_original>
